<compile_context>
chip_gen: v5e
topology: v5e:2x2
jax: 0.10.0
libtpu: 0.0.40
codegen_flags: <defaults>
</compile_context>

<pallas_src>
import numpy as np
import jax
import jax.numpy as jnp
from jax.experimental import pallas as pl
from jax.experimental.pallas import tpu as pltpu

LANE = 128                      # symbols run along lanes
LOG2E = 1.4426950408889634      # log2(e)


def _round_up(a, b):
    return ((a + b - 1) // b) * b


def _cdiv(a, b):
    return -(-a // b)


# ----------------------------- Pallas kernel --------------------------------
def _make_demapper_kernel(points_r, points_i, n_bits, block_rows, sub):
    """Demapper kernel with the constellation baked in as constants.

    points_r / points_i : python floats, length P = 2**n_bits (point index c
                          is labelled by its MSB-first binary representation,
                          exactly as in SymbolLogits2LLRs)
    block_rows          : sublane rows per grid step (multiple of `sub`)
    sub                 : sublane rows per inner-loop iteration (8 or 16)
    """
    P = len(points_r)
    K = int(n_bits)
    assert P == 2 ** K
    assert block_rows % sub == 0
    n_sub = block_rows // sub

    # Compile-time parts of the expanded bilinear distance, pre-scaled by
    # log2(e) so exp2 can be used without a range-reduction multiply.
    cu = [(-2.0 * points_r[c]) * LOG2E for c in range(P)]
    cv = [(-2.0 * points_i[c]) * LOG2E for c in range(P)]
    cw = [(points_r[c] * points_r[c] + points_i[c] * points_i[c]) * LOG2E
          for c in range(P)]

    def kernel(ninv_ref, yr_ref, yi_ref, out_ref):
        ninv = ninv_ref[0]                         # scalar  -1/N0  (SMEM)
        # Runtime scalar coefficients, hoisted above the loop (3P scalar muls
        # per grid step; consumed as scalar operands of vector ops).
        u = [cu[c] * ninv for c in range(P)]
        v = [cv[c] * ninv for c in range(P)]
        w = [cw[c] * ninv for c in range(P)]

        @pl.loop(0, n_sub)
        def _(r):
            i = pl.multiple_of(r * sub, sub)
            yr = yr_ref[pl.ds(i, sub), :]          # (sub, 128) lane-dense
            yi = yi_ref[pl.ds(i, sub), :]

            # logits (up to a per-symbol constant that cancels):
            #   z_c = log2(e) * ( -|y - p_c|^2 / N0  +  |y|^2 / N0 )
            z = [yr * u[c] + yi * v[c] + w[c] for c in range(P)]

            # shared max — cancels between the two logsumexp terms of the LLR
            m = z[0]
            for c in range(1, P):
                m = jnp.maximum(m, z[c])
            e = [jnp.exp2(zc - m) for zc in z]

            # Partial-sum tree over the binary index structure.  Point c's bit
            # labels are the MSB-first binary digits of c, so merging adjacent
            # pairs level by level yields, at level b, the sum over C_{b,1}
            # (odd entries) and finally `total`.
            sums = e
            s1 = [None] * K
            for b in range(K - 1, -1, -1):
                half = len(sums) // 2
                acc = sums[1]
                for j in range(1, half):
                    acc = acc + sums[2 * j + 1]
                s1[b] = acc
                sums = [sums[2 * j] + sums[2 * j + 1] for j in range(half)]
            total = sums[0]

            for b in range(K):
                s0 = total - s1[b]                 # mask0 = 1 - mask1
                out_ref[b, pl.ds(i, sub), :] = jnp.log(s1[b]) - jnp.log(s0)

    return kernel


# ------------------------------ JAX wrapper ----------------------------------
def make_demapper(points_complex: np.ndarray, n_bits_per_sym: int,
                  block_rows: int = 1024):
    """Returns demap(y, no) computing per-bit LLRs, matching Demapper.forward.

    block_rows=1024 -> 128K symbols per grid step (~1 MiB in / 2 MiB out,
    ~6 MiB of double-buffered VMEM), far under every generation's VMEM limit,
    while amortizing the ~0.35 us per-step cost.  The wrapper rebalances the
    block so a call issues >=2 grid steps whenever possible (v7x megacore).
    """
    P = int(points_complex.shape[0])
    K = int(n_bits_per_sym)
    assert P == 2 ** K
    points_r = [float(v) for v in np.asarray(points_complex).real]
    points_i = [float(v) for v in np.asarray(points_complex).imag]

    # 2-way ILP sub-tile for small constellations; fall back to 8 rows for
    # large P to stay within the 64-vreg register file.
    sub = 16 if P <= 16 else 8
    block_rows = _round_up(max(int(block_rows), sub), sub)

    def demap(y, no):
        # TODO(synk): `no` is only supported as a scalar noise variance (the
        # common expand_to_rank case); per-element noise tensors are not
        # plumbed into the kernel.
        no_arr = jnp.asarray(no, jnp.float32)
        assert no_arr.size == 1, (
            "Demapper Pallas kernel only supports a scalar noise variance N0.")

        orig_shape = y.shape
        M = int(np.prod(orig_shape))
        rows = max(1, _cdiv(M, LANE))
        rows_sub = _round_up(rows, sub)

        # Balanced block sizing: >=2 grid steps when possible (v7x megacore),
        # tail padding bounded by n_steps*sub rows, block capped at block_rows.
        n_steps = max(1, _cdiv(rows_sub, block_rows))
        if n_steps == 1 and rows_sub > sub:
            n_steps = 2
        br = _round_up(_cdiv(rows_sub, n_steps), sub)
        rows_pad = _round_up(rows_sub, br)
        M_pad = rows_pad * LANE

        y_flat = jnp.ravel(y)
        yr = jnp.real(y_flat).astype(jnp.float32)   # fused by XLA with the
        yi = jnp.imag(y_flat).astype(jnp.float32)   # pad/reshape below
        pad = M_pad - M
        yr = jnp.pad(yr, (0, pad)).reshape(rows_pad, LANE)
        yi = jnp.pad(yi, (0, pad)).reshape(rows_pad, LANE)
        ninv = jnp.reshape(-1.0 / no_arr, (1,))

        kernel = _make_demapper_kernel(points_r, points_i, K, br, sub)
        llr = pl.pallas_call(
            kernel,
            out_shape=jax.ShapeDtypeStruct((K, rows_pad, LANE), jnp.float32),
            grid=(rows_pad // br,),
            in_specs=[
                pl.BlockSpec(memory_space=pltpu.MemorySpace.SMEM),  # -1/N0
                pl.BlockSpec((br, LANE), lambda i: (i, 0)),         # yr
                pl.BlockSpec((br, LANE), lambda i: (i, 0)),         # yi
            ],
            out_specs=pl.BlockSpec((K, br, LANE), lambda i: (0, i, 0)),
            compiler_params=pltpu.CompilerParams(
                dimension_semantics=("parallel",)),
        )(ninv, yr, yi)

        # (K, rows_pad, 128) -> (M, K) -> [..., n*K]
        # TODO(synk): this transpose is one extra HBM round trip; drop it if
        # the downstream consumer can take the planar per-bit layout.
        llr = jnp.transpose(llr, (1, 2, 0)).reshape(M_pad, K)[:M]
        out_shape = tuple(orig_shape[:-1]) + (orig_shape[-1] * K,)
        return llr.reshape(out_shape)

    return demap


# -------------------------- pure-JAX reference -------------------------------
def demap_reference(y, no, points_c, n_bits_per_sym):
    P = int(points_c.shape[0])
    K = int(n_bits_per_sym)
    a = np.zeros((P, K), dtype=np.float32)
    for c in range(P):
        a[c, :] = np.array(list(np.binary_repr(c, K)), dtype=np.float32)
    mask1 = jnp.asarray(a, jnp.float32)
    mask0 = jnp.asarray(1.0 - a, jnp.float32)
    pts = jnp.asarray(points_c, jnp.complex64)
    sq = jnp.abs(y[..., None] - pts) ** 2            # [..., n, P]
    z = -sq / jnp.asarray(no, jnp.float32)
    m = jnp.max(z, axis=-1, keepdims=True)
    e = jnp.exp(z - m)
    s1 = jnp.einsum("...p,pk->...k", e, mask1)
    s0 = jnp.einsum("...p,pk->...k", e, mask0)
    llr = jnp.log(s1) - jnp.log(s0)                  # [..., n, K]
    out_shape = y.shape[:-1] + (y.shape[-1] * K,)
    return llr.reshape(out_shape)


# ----------------------- deterministic constellation -------------------------
def make_16qam_points():
    """16-QAM, n_bits_per_sym=4: bits (MSB-first) b0 b1 -> real level,
    b2 b3 -> imag level, levels {-3,-1,1,3}/sqrt(10)."""
    K = 4
    P = 2 ** K
    pts = np.zeros(P, dtype=np.complex64)
    for c in range(P):
        b = [int(x) for x in np.binary_repr(c, K)]
        r = 2.0 * (2 * b[0] + b[1]) - 3.0
        i = 2.0 * (2 * b[2] + b[3]) - 3.0
        pts[c] = (r + 1j * i) / np.sqrt(10.0)
    return pts, K


if __name__ == "__main__":
    points_np, n_bits_per_sym = make_16qam_points()
    demap = make_demapper(points_np, n_bits_per_sym)

    # deterministic small inputs: y of shape [batch=2, n=8] complex64, scalar N0
    key = jax.random.PRNGKey(0)
    kr, ki = jax.random.split(key)
    yr = jax.random.normal(kr, (2, 8), dtype=jnp.float32)
    yi = jax.random.normal(ki, (2, 8), dtype=jnp.float32)
    y = (yr + 1j * yi).astype(jnp.complex64)
    no = 0.5

    llr = jax.block_until_ready(demap(y, no))

    ref = demap_reference(y, no, points_np, n_bits_per_sym)
    assert llr.shape == (2, 8 * n_bits_per_sym), llr.shape
    assert np.allclose(np.asarray(llr), np.asarray(ref), rtol=1e-4, atol=1e-3)

    print("KERNEL_OK")
</pallas_src>

<mosaic_0001>
module attributes {stable_mosaic.version = 11 : i64} {
  func.func @kernel(%arg0: i32, %arg1: memref<1xf32, #tpu.memory_space<smem>>, %arg2: memref<16x128xf32, #tpu.memory_space<vmem>>, %arg3: memref<16x128xf32, #tpu.memory_space<vmem>>, %arg4: memref<4x16x128xf32, #tpu.memory_space<vmem>>) attributes {dimension_semantics = [#tpu.dimension_semantics<parallel>], iteration_bounds = array<i64: 1>, scalar_prefetch = 0 : i64, scratch_operands = 0 : i64, tpu.core_type = #tpu.core_type<tc>, window_params = [{transform_indices = @transform_0, window_bounds = array<i64: 1>}, {transform_indices = @transform_1, window_bounds = array<i64: 16, 128>}, {transform_indices = @transform_2, window_bounds = array<i64: 16, 128>}, {transform_indices = @transform_3, window_bounds = array<i64: 4, 16, 128>}]} {
    %c0 = arith.constant 0 : index
    %0 = memref.load %arg1[%c0] : memref<1xf32, #tpu.memory_space<smem>>
    %cst = arith.constant 2.73732138 : f32
    %1 = arith.mulf %cst, %0 : f32
    %cst_0 = arith.constant 2.73732138 : f32
    %2 = arith.mulf %cst_0, %0 : f32
    %cst_1 = arith.constant 2.73732138 : f32
    %3 = arith.mulf %cst_1, %0 : f32
    %cst_2 = arith.constant 2.73732138 : f32
    %4 = arith.mulf %cst_2, %0 : f32
    %cst_3 = arith.constant 0.912440478 : f32
    %5 = arith.mulf %cst_3, %0 : f32
    %cst_4 = arith.constant 0.912440478 : f32
    %6 = arith.mulf %cst_4, %0 : f32
    %cst_5 = arith.constant 0.912440478 : f32
    %7 = arith.mulf %cst_5, %0 : f32
    %cst_6 = arith.constant 0.912440478 : f32
    %8 = arith.mulf %cst_6, %0 : f32
    %cst_7 = arith.constant -0.912440478 : f32
    %9 = arith.mulf %cst_7, %0 : f32
    %cst_8 = arith.constant -0.912440478 : f32
    %10 = arith.mulf %cst_8, %0 : f32
    %cst_9 = arith.constant -0.912440478 : f32
    %11 = arith.mulf %cst_9, %0 : f32
    %cst_10 = arith.constant -0.912440478 : f32
    %12 = arith.mulf %cst_10, %0 : f32
    %cst_11 = arith.constant -2.73732138 : f32
    %13 = arith.mulf %cst_11, %0 : f32
    %cst_12 = arith.constant -2.73732138 : f32
    %14 = arith.mulf %cst_12, %0 : f32
    %cst_13 = arith.constant -2.73732138 : f32
    %15 = arith.mulf %cst_13, %0 : f32
    %cst_14 = arith.constant -2.73732138 : f32
    %16 = arith.mulf %cst_14, %0 : f32
    %cst_15 = arith.constant 2.73732138 : f32
    %17 = arith.mulf %cst_15, %0 : f32
    %cst_16 = arith.constant 0.912440478 : f32
    %18 = arith.mulf %cst_16, %0 : f32
    %cst_17 = arith.constant -0.912440478 : f32
    %19 = arith.mulf %cst_17, %0 : f32
    %cst_18 = arith.constant -2.73732138 : f32
    %20 = arith.mulf %cst_18, %0 : f32
    %cst_19 = arith.constant 2.73732138 : f32
    %21 = arith.mulf %cst_19, %0 : f32
    %cst_20 = arith.constant 0.912440478 : f32
    %22 = arith.mulf %cst_20, %0 : f32
    %cst_21 = arith.constant -0.912440478 : f32
    %23 = arith.mulf %cst_21, %0 : f32
    %cst_22 = arith.constant -2.73732138 : f32
    %24 = arith.mulf %cst_22, %0 : f32
    %cst_23 = arith.constant 2.73732138 : f32
    %25 = arith.mulf %cst_23, %0 : f32
    %cst_24 = arith.constant 0.912440478 : f32
    %26 = arith.mulf %cst_24, %0 : f32
    %cst_25 = arith.constant -0.912440478 : f32
    %27 = arith.mulf %cst_25, %0 : f32
    %cst_26 = arith.constant -2.73732138 : f32
    %28 = arith.mulf %cst_26, %0 : f32
    %cst_27 = arith.constant 2.73732138 : f32
    %29 = arith.mulf %cst_27, %0 : f32
    %cst_28 = arith.constant 0.912440478 : f32
    %30 = arith.mulf %cst_28, %0 : f32
    %cst_29 = arith.constant -0.912440478 : f32
    %31 = arith.mulf %cst_29, %0 : f32
    %cst_30 = arith.constant -2.73732138 : f32
    %32 = arith.mulf %cst_30, %0 : f32
    %cst_31 = arith.constant 2.59685111 : f32
    %33 = arith.mulf %cst_31, %0 : f32
    %cst_32 = arith.constant 1.44269514 : f32
    %34 = arith.mulf %cst_32, %0 : f32
    %cst_33 = arith.constant 1.44269514 : f32
    %35 = arith.mulf %cst_33, %0 : f32
    %cst_34 = arith.constant 2.59685111 : f32
    %36 = arith.mulf %cst_34, %0 : f32
    %cst_35 = arith.constant 1.44269514 : f32
    %37 = arith.mulf %cst_35, %0 : f32
    %cst_36 = arith.constant 2.885390e-01 : f32
    %38 = arith.mulf %cst_36, %0 : f32
    %cst_37 = arith.constant 2.885390e-01 : f32
    %39 = arith.mulf %cst_37, %0 : f32
    %cst_38 = arith.constant 1.44269514 : f32
    %40 = arith.mulf %cst_38, %0 : f32
    %cst_39 = arith.constant 1.44269514 : f32
    %41 = arith.mulf %cst_39, %0 : f32
    %cst_40 = arith.constant 2.885390e-01 : f32
    %42 = arith.mulf %cst_40, %0 : f32
    %cst_41 = arith.constant 2.885390e-01 : f32
    %43 = arith.mulf %cst_41, %0 : f32
    %cst_42 = arith.constant 1.44269514 : f32
    %44 = arith.mulf %cst_42, %0 : f32
    %cst_43 = arith.constant 2.59685111 : f32
    %45 = arith.mulf %cst_43, %0 : f32
    %cst_44 = arith.constant 1.44269514 : f32
    %46 = arith.mulf %cst_44, %0 : f32
    %cst_45 = arith.constant 1.44269514 : f32
    %47 = arith.mulf %cst_45, %0 : f32
    %cst_46 = arith.constant 2.59685111 : f32
    %48 = arith.mulf %cst_46, %0 : f32
    %c0_i32 = arith.constant 0 : i32
    %c1_i32 = arith.constant 1 : i32
    %49 = arith.muli %c0_i32, %c1_i32 : i32
    %c0_i32_47 = arith.constant 0 : i32
    %50 = arith.addi %c0_i32_47, %49 : i32
    %c16_i32 = arith.constant 16 : i32
    %51 = arith.muli %50, %c16_i32 : i32
    %52 = tpu.assume_multiple %51, 16 : i32
    %53 = arith.index_cast %52 : i32 to index
    %c0_48 = arith.constant 0 : index
    %54 = vector.load %arg2[%53, %c0_48] : memref<16x128xf32, #tpu.memory_space<vmem>>, vector<16x128xf32>
    %55 = arith.index_cast %52 : i32 to index
    %c0_49 = arith.constant 0 : index
    %56 = vector.load %arg3[%55, %c0_49] : memref<16x128xf32, #tpu.memory_space<vmem>>, vector<16x128xf32>
    %57 = vector.broadcast %1 : f32 to vector<16x128xf32>
    %58 = arith.mulf %54, %57 : vector<16x128xf32>
    %59 = vector.broadcast %17 : f32 to vector<16x128xf32>
    %60 = arith.mulf %56, %59 : vector<16x128xf32>
    %61 = arith.addf %58, %60 : vector<16x128xf32>
    %62 = vector.broadcast %33 : f32 to vector<16x128xf32>
    %63 = arith.addf %61, %62 : vector<16x128xf32>
    %64 = vector.broadcast %2 : f32 to vector<16x128xf32>
    %65 = arith.mulf %54, %64 : vector<16x128xf32>
    %66 = vector.broadcast %18 : f32 to vector<16x128xf32>
    %67 = arith.mulf %56, %66 : vector<16x128xf32>
    %68 = arith.addf %65, %67 : vector<16x128xf32>
    %69 = vector.broadcast %34 : f32 to vector<16x128xf32>
    %70 = arith.addf %68, %69 : vector<16x128xf32>
    %71 = vector.broadcast %3 : f32 to vector<16x128xf32>
    %72 = arith.mulf %54, %71 : vector<16x128xf32>
    %73 = vector.broadcast %19 : f32 to vector<16x128xf32>
    %74 = arith.mulf %56, %73 : vector<16x128xf32>
    %75 = arith.addf %72, %74 : vector<16x128xf32>
    %76 = vector.broadcast %35 : f32 to vector<16x128xf32>
    %77 = arith.addf %75, %76 : vector<16x128xf32>
    %78 = vector.broadcast %4 : f32 to vector<16x128xf32>
    %79 = arith.mulf %54, %78 : vector<16x128xf32>
    %80 = vector.broadcast %20 : f32 to vector<16x128xf32>
    %81 = arith.mulf %56, %80 : vector<16x128xf32>
    %82 = arith.addf %79, %81 : vector<16x128xf32>
    %83 = vector.broadcast %36 : f32 to vector<16x128xf32>
    %84 = arith.addf %82, %83 : vector<16x128xf32>
    %85 = vector.broadcast %5 : f32 to vector<16x128xf32>
    %86 = arith.mulf %54, %85 : vector<16x128xf32>
    %87 = vector.broadcast %21 : f32 to vector<16x128xf32>
    %88 = arith.mulf %56, %87 : vector<16x128xf32>
    %89 = arith.addf %86, %88 : vector<16x128xf32>
    %90 = vector.broadcast %37 : f32 to vector<16x128xf32>
    %91 = arith.addf %89, %90 : vector<16x128xf32>
    %92 = vector.broadcast %6 : f32 to vector<16x128xf32>
    %93 = arith.mulf %54, %92 : vector<16x128xf32>
    %94 = vector.broadcast %22 : f32 to vector<16x128xf32>
    %95 = arith.mulf %56, %94 : vector<16x128xf32>
    %96 = arith.addf %93, %95 : vector<16x128xf32>
    %97 = vector.broadcast %38 : f32 to vector<16x128xf32>
    %98 = arith.addf %96, %97 : vector<16x128xf32>
    %99 = vector.broadcast %7 : f32 to vector<16x128xf32>
    %100 = arith.mulf %54, %99 : vector<16x128xf32>
    %101 = vector.broadcast %23 : f32 to vector<16x128xf32>
    %102 = arith.mulf %56, %101 : vector<16x128xf32>
    %103 = arith.addf %100, %102 : vector<16x128xf32>
    %104 = vector.broadcast %39 : f32 to vector<16x128xf32>
    %105 = arith.addf %103, %104 : vector<16x128xf32>
    %106 = vector.broadcast %8 : f32 to vector<16x128xf32>
    %107 = arith.mulf %54, %106 : vector<16x128xf32>
    %108 = vector.broadcast %24 : f32 to vector<16x128xf32>
    %109 = arith.mulf %56, %108 : vector<16x128xf32>
    %110 = arith.addf %107, %109 : vector<16x128xf32>
    %111 = vector.broadcast %40 : f32 to vector<16x128xf32>
    %112 = arith.addf %110, %111 : vector<16x128xf32>
    %113 = vector.broadcast %9 : f32 to vector<16x128xf32>
    %114 = arith.mulf %54, %113 : vector<16x128xf32>
    %115 = vector.broadcast %25 : f32 to vector<16x128xf32>
    %116 = arith.mulf %56, %115 : vector<16x128xf32>
    %117 = arith.addf %114, %116 : vector<16x128xf32>
    %118 = vector.broadcast %41 : f32 to vector<16x128xf32>
    %119 = arith.addf %117, %118 : vector<16x128xf32>
    %120 = vector.broadcast %10 : f32 to vector<16x128xf32>
    %121 = arith.mulf %54, %120 : vector<16x128xf32>
    %122 = vector.broadcast %26 : f32 to vector<16x128xf32>
    %123 = arith.mulf %56, %122 : vector<16x128xf32>
    %124 = arith.addf %121, %123 : vector<16x128xf32>
    %125 = vector.broadcast %42 : f32 to vector<16x128xf32>
    %126 = arith.addf %124, %125 : vector<16x128xf32>
    %127 = vector.broadcast %11 : f32 to vector<16x128xf32>
    %128 = arith.mulf %54, %127 : vector<16x128xf32>
    %129 = vector.broadcast %27 : f32 to vector<16x128xf32>
    %130 = arith.mulf %56, %129 : vector<16x128xf32>
    %131 = arith.addf %128, %130 : vector<16x128xf32>
    %132 = vector.broadcast %43 : f32 to vector<16x128xf32>
    %133 = arith.addf %131, %132 : vector<16x128xf32>
    %134 = vector.broadcast %12 : f32 to vector<16x128xf32>
    %135 = arith.mulf %54, %134 : vector<16x128xf32>
    %136 = vector.broadcast %28 : f32 to vector<16x128xf32>
    %137 = arith.mulf %56, %136 : vector<16x128xf32>
    %138 = arith.addf %135, %137 : vector<16x128xf32>
    %139 = vector.broadcast %44 : f32 to vector<16x128xf32>
    %140 = arith.addf %138, %139 : vector<16x128xf32>
    %141 = vector.broadcast %13 : f32 to vector<16x128xf32>
    %142 = arith.mulf %54, %141 : vector<16x128xf32>
    %143 = vector.broadcast %29 : f32 to vector<16x128xf32>
    %144 = arith.mulf %56, %143 : vector<16x128xf32>
    %145 = arith.addf %142, %144 : vector<16x128xf32>
    %146 = vector.broadcast %45 : f32 to vector<16x128xf32>
    %147 = arith.addf %145, %146 : vector<16x128xf32>
    %148 = vector.broadcast %14 : f32 to vector<16x128xf32>
    %149 = arith.mulf %54, %148 : vector<16x128xf32>
    %150 = vector.broadcast %30 : f32 to vector<16x128xf32>
    %151 = arith.mulf %56, %150 : vector<16x128xf32>
    %152 = arith.addf %149, %151 : vector<16x128xf32>
    %153 = vector.broadcast %46 : f32 to vector<16x128xf32>
    %154 = arith.addf %152, %153 : vector<16x128xf32>
    %155 = vector.broadcast %15 : f32 to vector<16x128xf32>
    %156 = arith.mulf %54, %155 : vector<16x128xf32>
    %157 = vector.broadcast %31 : f32 to vector<16x128xf32>
    %158 = arith.mulf %56, %157 : vector<16x128xf32>
    %159 = arith.addf %156, %158 : vector<16x128xf32>
    %160 = vector.broadcast %47 : f32 to vector<16x128xf32>
    %161 = arith.addf %159, %160 : vector<16x128xf32>
    %162 = vector.broadcast %16 : f32 to vector<16x128xf32>
    %163 = arith.mulf %54, %162 : vector<16x128xf32>
    %164 = vector.broadcast %32 : f32 to vector<16x128xf32>
    %165 = arith.mulf %56, %164 : vector<16x128xf32>
    %166 = arith.addf %163, %165 : vector<16x128xf32>
    %167 = vector.broadcast %48 : f32 to vector<16x128xf32>
    %168 = arith.addf %166, %167 : vector<16x128xf32>
    %169 = arith.maximumf %63, %70 : vector<16x128xf32>
    %170 = arith.maximumf %169, %77 : vector<16x128xf32>
    %171 = arith.maximumf %170, %84 : vector<16x128xf32>
    %172 = arith.maximumf %171, %91 : vector<16x128xf32>
    %173 = arith.maximumf %172, %98 : vector<16x128xf32>
    %174 = arith.maximumf %173, %105 : vector<16x128xf32>
    %175 = arith.maximumf %174, %112 : vector<16x128xf32>
    %176 = arith.maximumf %175, %119 : vector<16x128xf32>
    %177 = arith.maximumf %176, %126 : vector<16x128xf32>
    %178 = arith.maximumf %177, %133 : vector<16x128xf32>
    %179 = arith.maximumf %178, %140 : vector<16x128xf32>
    %180 = arith.maximumf %179, %147 : vector<16x128xf32>
    %181 = arith.maximumf %180, %154 : vector<16x128xf32>
    %182 = arith.maximumf %181, %161 : vector<16x128xf32>
    %183 = arith.maximumf %182, %168 : vector<16x128xf32>
    %184 = arith.subf %63, %183 : vector<16x128xf32>
    %185 = math.exp2 %184 : vector<16x128xf32>
    %186 = arith.subf %70, %183 : vector<16x128xf32>
    %187 = math.exp2 %186 : vector<16x128xf32>
    %188 = arith.subf %77, %183 : vector<16x128xf32>
    %189 = math.exp2 %188 : vector<16x128xf32>
    %190 = arith.subf %84, %183 : vector<16x128xf32>
    %191 = math.exp2 %190 : vector<16x128xf32>
    %192 = arith.subf %91, %183 : vector<16x128xf32>
    %193 = math.exp2 %192 : vector<16x128xf32>
    %194 = arith.subf %98, %183 : vector<16x128xf32>
    %195 = math.exp2 %194 : vector<16x128xf32>
    %196 = arith.subf %105, %183 : vector<16x128xf32>
    %197 = math.exp2 %196 : vector<16x128xf32>
    %198 = arith.subf %112, %183 : vector<16x128xf32>
    %199 = math.exp2 %198 : vector<16x128xf32>
    %200 = arith.subf %119, %183 : vector<16x128xf32>
    %201 = math.exp2 %200 : vector<16x128xf32>
    %202 = arith.subf %126, %183 : vector<16x128xf32>
    %203 = math.exp2 %202 : vector<16x128xf32>
    %204 = arith.subf %133, %183 : vector<16x128xf32>
    %205 = math.exp2 %204 : vector<16x128xf32>
    %206 = arith.subf %140, %183 : vector<16x128xf32>
    %207 = math.exp2 %206 : vector<16x128xf32>
    %208 = arith.subf %147, %183 : vector<16x128xf32>
    %209 = math.exp2 %208 : vector<16x128xf32>
    %210 = arith.subf %154, %183 : vector<16x128xf32>
    %211 = math.exp2 %210 : vector<16x128xf32>
    %212 = arith.subf %161, %183 : vector<16x128xf32>
    %213 = math.exp2 %212 : vector<16x128xf32>
    %214 = arith.subf %168, %183 : vector<16x128xf32>
    %215 = math.exp2 %214 : vector<16x128xf32>
    %216 = arith.addf %187, %191 : vector<16x128xf32>
    %217 = arith.addf %216, %195 : vector<16x128xf32>
    %218 = arith.addf %217, %199 : vector<16x128xf32>
    %219 = arith.addf %218, %203 : vector<16x128xf32>
    %220 = arith.addf %219, %207 : vector<16x128xf32>
    %221 = arith.addf %220, %211 : vector<16x128xf32>
    %222 = arith.addf %221, %215 : vector<16x128xf32>
    %223 = arith.addf %185, %187 : vector<16x128xf32>
    %224 = arith.addf %189, %191 : vector<16x128xf32>
    %225 = arith.addf %193, %195 : vector<16x128xf32>
    %226 = arith.addf %197, %199 : vector<16x128xf32>
    %227 = arith.addf %201, %203 : vector<16x128xf32>
    %228 = arith.addf %205, %207 : vector<16x128xf32>
    %229 = arith.addf %209, %211 : vector<16x128xf32>
    %230 = arith.addf %213, %215 : vector<16x128xf32>
    %231 = arith.addf %224, %226 : vector<16x128xf32>
    %232 = arith.addf %231, %228 : vector<16x128xf32>
    %233 = arith.addf %232, %230 : vector<16x128xf32>
    %234 = arith.addf %223, %224 : vector<16x128xf32>
    %235 = arith.addf %225, %226 : vector<16x128xf32>
    %236 = arith.addf %227, %228 : vector<16x128xf32>
    %237 = arith.addf %229, %230 : vector<16x128xf32>
    %238 = arith.addf %235, %237 : vector<16x128xf32>
    %239 = arith.addf %234, %235 : vector<16x128xf32>
    %240 = arith.addf %236, %237 : vector<16x128xf32>
    %241 = arith.addf %239, %240 : vector<16x128xf32>
    %242 = arith.subf %241, %240 : vector<16x128xf32>
    %243 = math.log %240 : vector<16x128xf32>
    %244 = math.log %242 : vector<16x128xf32>
    %245 = arith.subf %243, %244 : vector<16x128xf32>
    %c0_50 = arith.constant 0 : index
    %246 = arith.index_cast %52 : i32 to index
    %c0_51 = arith.constant 0 : index
    %247 = vector.load %arg4[%c0_50, %246, %c0_51] : memref<4x16x128xf32, #tpu.memory_space<vmem>>, vector<1x16x128xf32>
    %248 = vector.shape_cast %247 : vector<1x16x128xf32> to vector<16x128xf32>
    %249 = vector.shape_cast %245 : vector<16x128xf32> to vector<1x16x128xf32>
    tpu.vector_store %arg4[%c0_50, %246, %c0_51], %249 {strides = array<i32>} : memref<4x16x128xf32, #tpu.memory_space<vmem>>, vector<1x16x128xf32>,
    %250 = arith.subf %241, %238 : vector<16x128xf32>
    %251 = math.log %238 : vector<16x128xf32>
    %252 = math.log %250 : vector<16x128xf32>
    %253 = arith.subf %251, %252 : vector<16x128xf32>
    %c1 = arith.constant 1 : index
    %254 = arith.index_cast %52 : i32 to index
    %c0_52 = arith.constant 0 : index
    %255 = vector.load %arg4[%c1, %254, %c0_52] : memref<4x16x128xf32, #tpu.memory_space<vmem>>, vector<1x16x128xf32>
    %256 = vector.shape_cast %255 : vector<1x16x128xf32> to vector<16x128xf32>
    %257 = vector.shape_cast %253 : vector<16x128xf32> to vector<1x16x128xf32>
    tpu.vector_store %arg4[%c1, %254, %c0_52], %257 {strides = array<i32>} : memref<4x16x128xf32, #tpu.memory_space<vmem>>, vector<1x16x128xf32>,
    %258 = arith.subf %241, %233 : vector<16x128xf32>
    %259 = math.log %233 : vector<16x128xf32>
    %260 = math.log %258 : vector<16x128xf32>
    %261 = arith.subf %259, %260 : vector<16x128xf32>
    %c2 = arith.constant 2 : index
    %262 = arith.index_cast %52 : i32 to index
    %c0_53 = arith.constant 0 : index
    %263 = vector.load %arg4[%c2, %262, %c0_53] : memref<4x16x128xf32, #tpu.memory_space<vmem>>, vector<1x16x128xf32>
    %264 = vector.shape_cast %263 : vector<1x16x128xf32> to vector<16x128xf32>
    %265 = vector.shape_cast %261 : vector<16x128xf32> to vector<1x16x128xf32>
    tpu.vector_store %arg4[%c2, %262, %c0_53], %265 {strides = array<i32>} : memref<4x16x128xf32, #tpu.memory_space<vmem>>, vector<1x16x128xf32>,
    %266 = arith.subf %241, %222 : vector<16x128xf32>
    %267 = math.log %222 : vector<16x128xf32>
    %268 = math.log %266 : vector<16x128xf32>
    %269 = arith.subf %267, %268 : vector<16x128xf32>
    %c3 = arith.constant 3 : index
    %270 = arith.index_cast %52 : i32 to index
    %c0_54 = arith.constant 0 : index
    %271 = vector.load %arg4[%c3, %270, %c0_54] : memref<4x16x128xf32, #tpu.memory_space<vmem>>, vector<1x16x128xf32>
    %272 = vector.shape_cast %271 : vector<1x16x128xf32> to vector<16x128xf32>
    %273 = vector.shape_cast %269 : vector<16x128xf32> to vector<1x16x128xf32>
    tpu.vector_store %arg4[%c3, %270, %c0_54], %273 {strides = array<i32>} : memref<4x16x128xf32, #tpu.memory_space<vmem>>, vector<1x16x128xf32>,
    %c1_i32_55 = arith.constant 1 : i32
    return
  }
  func.func @transform_0(%arg0: i32) -> i32 {
    %c0_i32 = arith.constant 0 : i32
    %c0_i32_0 = arith.constant 0 : i32
    return %c0_i32 : i32
  }
  func.func @transform_1(%arg0: i32) -> (i32, i32) {
    %c0_i32 = arith.constant 0 : i32
    %c0_i32_0 = arith.constant 0 : i32
    return %arg0, %c0_i32 : i32, i32
  }
  func.func @transform_2(%arg0: i32) -> (i32, i32) {
    %c0_i32 = arith.constant 0 : i32
    %c0_i32_0 = arith.constant 0 : i32
    return %arg0, %c0_i32 : i32, i32
  }
  func.func @transform_3(%arg0: i32) -> (i32, i32, i32) {
    %c0_i32 = arith.constant 0 : i32
    %c0_i32_0 = arith.constant 0 : i32
    %c0_i32_1 = arith.constant 0 : i32
    return %c0_i32, %arg0, %c0_i32_0 : i32, i32, i32
  }
}

</mosaic_0001>

<llo_original>
// kernel: tpu_custom_call.1
$region0: #{tpu_custom_call.1}
  #allocation0 [shape = 'u32[]', space=smem, size = 0x4, offset = 0x4, fixed_abs, tag = 'smem constant byte address 0x4 - core index']
  #allocation1 [shape = 'u32[72,128]{1,0:T(1,128)}', space=vmem, size = 0x9000, scoped, tag = 'internal scratch']
  #allocation2 [shape = 'f32[1]{0:T(128)S(6)}', space=smem, size = 0x200, scoped, tag = 'scoped memory for tpu_custom_call.1']
  %s0 = inlined_call_operand.<no memory space> [shape: f32[1], index: 0, kind: input, shape index: {}]
  %s1 = inlined_call_operand.hbm [shape: f32[16,128], index: 1, kind: input, shape index: {}]
  %s2 = inlined_call_operand.hbm [shape: f32[16,128], index: 2, kind: input, shape index: {}]
  %s3 = inlined_call_operand.hbm [shape: f32[4,16,128], index: 3, kind: output, shape index: {}]
  %s4 = sld [smem:[#allocation0]]
  $region30: #{tpu_custom_call.1} parent=0
    _
  %s6 = ssub.s32 1, %s4
  %s7 = scalar_select 0, %s6, %s4
  %8 = sst [smem:[#allocation2]] %s0
  $region1: #{tpu_custom_call.1} parent=0
    #allocation3 [shape = 'u8[8192]{0}', space=vmem, size = 0x2000, scoped, tag = 'input window, operand 1, single buffered']
    #allocation4 [shape = 's32[1]{0}', space=sflag, size = 0x4, scoped, tag = 'scoped memory for tpu_custom_call.1']
    #allocation5 [shape = 's32[1]{0}', space=sflag, size = 0x4, scoped, tag = 'scoped memory for tpu_custom_call.1']
    #allocation6 [shape = 'u8[8192]{0}', space=vmem, size = 0x2000, scoped, tag = 'input window, operand 2, single buffered']
    #allocation7 [shape = 's32[1]{0}', space=sflag, size = 0x4, scoped, tag = 'scoped memory for tpu_custom_call.1']
    #allocation8 [shape = 'u8[32768]{0}', space=vmem, size = 0x8000, scoped, tag = 'output window, operand 0, single buffered']
    %9 = vsyncpa [#allocation4], 0
    %10 = vsyncpa [#allocation7], 0
    %11 = vsyncpa [#allocation5], 0
    // Predicated region
    $region2: #{tpu_custom_call.1} parent=1 // pred_check
      _
    $region3: #{tpu_custom_call.1} parent=1 // pred_check_branch
      %13 = sbr.rel (0) target = $region5
    $region4: #{tpu_custom_call.1} parent=1 // pred_region
      _
    $region5: #{tpu_custom_call.1} parent=1 // pred_fallthru
      _
    // Predicated region
    $region6: #{tpu_custom_call.1} parent=1 // pred_check
      _
    $region7: #{tpu_custom_call.1} parent=1 // pred_check_branch
      %15 = sbr.rel (0) target = $region9
    $region8: #{tpu_custom_call.1} parent=1 // pred_region
      %17 = vsyncadd [#allocation4], 0
      %s18 = sshll.u32 %s1, 4
      %s19 = int_to_ptr.hbm [resolvable:$true] %s18
      %s20 = sshll.u32 [#allocation3], 4
      %s21 = int_to_ptr.vmem [resolvable:$true] %s20
      %26 = dma.hbm_to_vmem [thread:$0]  %s19, 256, %s21, [#allocation4], 128, 128, 8
    $region9: #{tpu_custom_call.1} parent=1 // pred_fallthru
      _
    // Predicated region
    $region10: #{tpu_custom_call.1} parent=1 // pred_check
      _
    $region11: #{tpu_custom_call.1} parent=1 // pred_check_branch
      %28 = sbr.rel (0) target = $region13
    $region12: #{tpu_custom_call.1} parent=1 // pred_region
      %30 = vsyncadd [#allocation7], 0
      %s31 = sshll.u32 %s2, 4
      %s32 = int_to_ptr.hbm [resolvable:$true] %s31
      %s33 = sshll.u32 [#allocation6], 4
      %s34 = int_to_ptr.vmem [resolvable:$true] %s33
      %39 = dma.hbm_to_vmem [thread:$0]  %s32, 256, %s34, [#allocation7], 128, 128, 8
    $region13: #{tpu_custom_call.1} parent=1 // pred_fallthru
      _
    // Predicated region
    $region14: #{tpu_custom_call.1} parent=1 // pred_check
      _
    $region15: #{tpu_custom_call.1} parent=1 // pred_check_branch
      %41 = sbr.rel (0) target = $region17
    $region16: #{tpu_custom_call.1} parent=1 // pred_region
      %43 = dma.done [#allocation4], 256
    $region17: #{tpu_custom_call.1} parent=1 // pred_fallthru
      _
    // Predicated region
    $region18: #{tpu_custom_call.1} parent=1 // pred_check
      _
    $region19: #{tpu_custom_call.1} parent=1 // pred_check_branch
      %45 = sbr.rel (0) target = $region21
    $region20: #{tpu_custom_call.1} parent=1 // pred_region
      %47 = dma.done [#allocation7], 256
    $region21: #{tpu_custom_call.1} parent=1 // pred_fallthru
      _
    %s48 = sld [smem:[#allocation2]]
    %s49 = smul.f32 %s48, 2.7373214
    %s50 = smul.f32 %s48, 0.9124405
    %s51 = smul.f32 %s48, -0.9124405
    %s52 = smul.f32 %s48, -2.7373214
    %s53 = smul.f32 %s48, 2.596851
    %s54 = smul.f32 %s48, 1.4426951
    %s55 = smul.f32 %s48, 0.288539
    %v56 = vld [vmem:[#allocation3] sm:$0xff]
    %v57 = vld [vmem:[#allocation3 + $0x8] sm:$0xff]
    %v58 = vld [vmem:[#allocation6] sm:$0xff]
    %v59 = vld [vmem:[#allocation6 + $0x8] sm:$0xff]
    %v60 = vstv %s49
    %v61 = vmul.f32 %v56, %v60
    %v62 = vmul.f32 %v57, %v60
    %v63 = vmul.f32 %v58, %v60
    %v64 = vmul.f32 %v59, %v60
    %v65 = vadd.f32 %v61, %v63
    %v66 = vadd.f32 %v62, %v64
    %v67 = vstv %s53
    %v68 = vadd.f32 %v65, %v67
    %v69 = vadd.f32 %v66, %v67
    %v70 = vstv %s50
    %v71 = vmul.f32 %v58, %v70
    %v72 = vmul.f32 %v59, %v70
    %v73 = vadd.f32 %v61, %v71
    %v74 = vadd.f32 %v62, %v72
    %v75 = vstv %s54
    %v76 = vadd.f32 %v73, %v75
    %v77 = vadd.f32 %v74, %v75
    %v78 = vstv %s51
    %v79 = vmul.f32 %v58, %v78
    %v80 = vmul.f32 %v59, %v78
    %v81 = vadd.f32 %v61, %v79
    %v82 = vadd.f32 %v62, %v80
    %v83 = vadd.f32 %v81, %v75
    %v84 = vadd.f32 %v82, %v75
    %v85 = vstv %s52
    %v86 = vmul.f32 %v58, %v85
    %v87 = vmul.f32 %v59, %v85
    %v88 = vadd.f32 %v61, %v86
    %v89 = vadd.f32 %v62, %v87
    %v90 = vadd.f32 %v88, %v67
    %v91 = vadd.f32 %v89, %v67
    %v92 = vmul.f32 %v56, %v70
    %v93 = vmul.f32 %v57, %v70
    %v94 = vadd.f32 %v92, %v63
    %v95 = vadd.f32 %v93, %v64
    %v96 = vadd.f32 %v94, %v75
    %v97 = vadd.f32 %v95, %v75
    %v98 = vadd.f32 %v92, %v71
    %v99 = vadd.f32 %v93, %v72
    %v100 = vstv %s55
    %v101 = vadd.f32 %v98, %v100
    %v102 = vadd.f32 %v99, %v100
    %v103 = vadd.f32 %v92, %v79
    %v104 = vadd.f32 %v93, %v80
    %v105 = vadd.f32 %v103, %v100
    %v106 = vadd.f32 %v104, %v100
    %v107 = vadd.f32 %v92, %v86
    %v108 = vadd.f32 %v93, %v87
    %v109 = vadd.f32 %v107, %v75
    %v110 = vadd.f32 %v108, %v75
    %v111 = vmul.f32 %v56, %v78
    %v112 = vmul.f32 %v57, %v78
    %v113 = vadd.f32 %v111, %v63
    %v114 = vadd.f32 %v112, %v64
    %v115 = vadd.f32 %v113, %v75
    %v116 = vadd.f32 %v114, %v75
    %v117 = vadd.f32 %v111, %v71
    %v118 = vadd.f32 %v112, %v72
    %v119 = vadd.f32 %v117, %v100
    %v120 = vadd.f32 %v118, %v100
    %v121 = vadd.f32 %v111, %v79
    %v122 = vadd.f32 %v112, %v80
    %v123 = vadd.f32 %v121, %v100
    %v124 = vadd.f32 %v122, %v100
    %v125 = vadd.f32 %v111, %v86
    %v126 = vadd.f32 %v112, %v87
    %v127 = vadd.f32 %v125, %v75
    %v128 = vadd.f32 %v126, %v75
    %v129 = vmul.f32 %v56, %v85
    %v130 = vmul.f32 %v57, %v85
    %v131 = vadd.f32 %v129, %v63
    %v132 = vadd.f32 %v130, %v64
    %v133 = vadd.f32 %v131, %v67
    %v134 = vadd.f32 %v132, %v67
    %v135 = vadd.f32 %v129, %v71
    %v136 = vadd.f32 %v130, %v72
    %v137 = vadd.f32 %v135, %v75
    %v138 = vadd.f32 %v136, %v75
    %v139 = vadd.f32 %v129, %v79
    %v140 = vadd.f32 %v130, %v80
    %v141 = vadd.f32 %v139, %v75
    %v142 = vadd.f32 %v140, %v75
    %v143 = vadd.f32 %v129, %v86
    %v144 = vadd.f32 %v130, %v87
    %v145 = vadd.f32 %v143, %v67
    %v146 = vadd.f32 %v144, %v67
    %v147 = vmax.f32 %v68, %v76
    %v148 = vmax.f32 %v69, %v77
    %v149 = vmax.f32 %v147, %v83
    %v150 = vmax.f32 %v148, %v84
    %v151 = vmax.f32 %v149, %v90
    %v152 = vmax.f32 %v150, %v91
    %v153 = vmax.f32 %v151, %v96
    %v154 = vmax.f32 %v152, %v97
    %v155 = vmax.f32 %v153, %v101
    %v156 = vmax.f32 %v154, %v102
    %v157 = vmax.f32 %v155, %v105
    %v158 = vmax.f32 %v156, %v106
    %v159 = vmax.f32 %v157, %v109
    %v160 = vmax.f32 %v158, %v110
    %v161 = vmax.f32 %v159, %v115
    %v162 = vmax.f32 %v160, %v116
    %v163 = vmax.f32 %v161, %v119
    %v164 = vmax.f32 %v162, %v120
    %v165 = vmax.f32 %v163, %v123
    %v166 = vmax.f32 %v164, %v124
    %v167 = vmax.f32 %v165, %v127
    %v168 = vmax.f32 %v166, %v128
    %v169 = vmax.f32 %v167, %v133
    %v170 = vmax.f32 %v168, %v134
    %v171 = vmax.f32 %v169, %v137
    %v172 = vmax.f32 %v170, %v138
    %v173 = vmax.f32 %v171, %v141
    %v174 = vmax.f32 %v172, %v142
    %v175 = vmax.f32 %v173, %v145
    %v176 = vmax.f32 %v174, %v146
    %v177 = vsub.f32 %v68, %v175
    %v178 = vsub.f32 %v69, %v176
    %v179 = vpow.pop %v177
    %v180 = vpow.pop %v178
    %v181 = vsub.f32 %v76, %v175
    %v182 = vsub.f32 %v77, %v176
    %v183 = vpow.pop %v181
    %v184 = vpow.pop %v182
    %v185 = vsub.f32 %v83, %v175
    %v186 = vsub.f32 %v84, %v176
    %v187 = vpow.pop %v185
    %v188 = vpow.pop %v186
    %v189 = vsub.f32 %v90, %v175
    %v190 = vsub.f32 %v91, %v176
    %v191 = vpow.pop %v189
    %v192 = vpow.pop %v190
    %v193 = vsub.f32 %v96, %v175
    %v194 = vsub.f32 %v97, %v176
    %v195 = vpow.pop %v193
    %v196 = vpow.pop %v194
    %v197 = vsub.f32 %v101, %v175
    %v198 = vsub.f32 %v102, %v176
    %v199 = vpow.pop %v197
    %v200 = vpow.pop %v198
    %v201 = vsub.f32 %v105, %v175
    %v202 = vsub.f32 %v106, %v176
    %v203 = vpow.pop %v201
    %v204 = vpow.pop %v202
    %v205 = vsub.f32 %v109, %v175
    %v206 = vsub.f32 %v110, %v176
    %v207 = vpow.pop %v205
    %v208 = vpow.pop %v206
    %v209 = vsub.f32 %v115, %v175
    %v210 = vsub.f32 %v116, %v176
    %v211 = vpow.pop %v209
    %v212 = vpow.pop %v210
    %v213 = vsub.f32 %v119, %v175
    %v214 = vsub.f32 %v120, %v176
    %v215 = vpow.pop %v213
    %v216 = vpow.pop %v214
    %v217 = vsub.f32 %v123, %v175
    %v218 = vsub.f32 %v124, %v176
    %v219 = vpow.pop %v217
    %v220 = vpow.pop %v218
    %v221 = vsub.f32 %v127, %v175
    %v222 = vsub.f32 %v128, %v176
    %v223 = vpow.pop %v221
    %v224 = vpow.pop %v222
    %v225 = vsub.f32 %v133, %v175
    %v226 = vsub.f32 %v134, %v176
    %v227 = vpow.pop %v225
    %v228 = vpow.pop %v226
    %v229 = vsub.f32 %v137, %v175
    %v230 = vsub.f32 %v138, %v176
    %v231 = vpow.pop %v229
    %v232 = vpow.pop %v230
    %v233 = vsub.f32 %v141, %v175
    %v234 = vsub.f32 %v142, %v176
    %v235 = vpow.pop %v233
    %v236 = vpow.pop %v234
    %v237 = vsub.f32 %v145, %v175
    %v238 = vsub.f32 %v146, %v176
    %v239 = vpow.pop %v237
    %v240 = vpow.pop %v238
    %v241 = vadd.f32 %v183, %v191
    %v242 = vadd.f32 %v184, %v192
    %v243 = vadd.f32 %v241, %v199
    %v244 = vadd.f32 %v242, %v200
    %v245 = vadd.f32 %v243, %v207
    %v246 = vadd.f32 %v244, %v208
    %v247 = vadd.f32 %v245, %v215
    %v248 = vadd.f32 %v246, %v216
    %v249 = vadd.f32 %v247, %v223
    %v250 = vadd.f32 %v248, %v224
    %v251 = vadd.f32 %v249, %v231
    %v252 = vadd.f32 %v250, %v232
    %v253 = vadd.f32 %v251, %v239
    %v254 = vadd.f32 %v252, %v240
    %v255 = vadd.f32 %v179, %v183
    %v256 = vadd.f32 %v180, %v184
    %v257 = vadd.f32 %v187, %v191
    %v258 = vadd.f32 %v188, %v192
    %v259 = vadd.f32 %v195, %v199
    %v260 = vadd.f32 %v196, %v200
    %v261 = vadd.f32 %v203, %v207
    %v262 = vadd.f32 %v204, %v208
    %v263 = vadd.f32 %v211, %v215
    %v264 = vadd.f32 %v212, %v216
    %v265 = vadd.f32 %v219, %v223
    %v266 = vadd.f32 %v220, %v224
    %v267 = vadd.f32 %v227, %v231
    %v268 = vadd.f32 %v228, %v232
    %v269 = vadd.f32 %v235, %v239
    %v270 = vadd.f32 %v236, %v240
    %v271 = vadd.f32 %v257, %v261
    %v272 = vadd.f32 %v258, %v262
    %v273 = vadd.f32 %v271, %v265
    %v274 = vadd.f32 %v272, %v266
    %v275 = vadd.f32 %v273, %v269
    %v276 = vadd.f32 %v274, %v270
    %v277 = vadd.f32 %v255, %v257
    %v278 = vadd.f32 %v256, %v258
    %v279 = vadd.f32 %v259, %v261
    %v280 = vadd.f32 %v260, %v262
    %v281 = vadd.f32 %v263, %v265
    %v282 = vadd.f32 %v264, %v266
    %v283 = vadd.f32 %v267, %v269
    %v284 = vadd.f32 %v268, %v270
    %v285 = vadd.f32 %v279, %v283
    %v286 = vadd.f32 %v280, %v284
    %v287 = vadd.f32 %v277, %v279
    %v288 = vadd.f32 %v278, %v280
    %v289 = vadd.f32 %v281, %v283
    %v290 = vadd.f32 %v282, %v284
    %v291 = vadd.f32 %v287, %v289
    %v292 = vadd.f32 %v288, %v290
    %v293 = vsub.f32 %v291, %v289
    %v294 = vsub.f32 %v292, %v290
    %v295 = vlog2.pop %v289
    %v296 = vmul.f32 %v295, 0.6931472
    %v297 = vlog2.pop %v290
    %v298 = vmul.f32 %v297, 0.6931472
    %v299 = vlog2.pop %v293
    %v300 = vmul.f32 %v299, 0.6931472
    %v301 = vlog2.pop %v294
    %v302 = vmul.f32 %v301, 0.6931472
    %v303 = vsub.f32 %v296, %v300
    %v304 = vsub.f32 %v298, %v302
    %305 = vst [vmem:[#allocation8] sm:$0xff] %v303
    %306 = vst [vmem:[#allocation8 + $0x8] sm:$0xff] %v304
    %v307 = vsub.f32 %v291, %v285
    %v308 = vsub.f32 %v292, %v286
    %v309 = vlog2.pop %v285
    %v310 = vmul.f32 %v309, 0.6931472
    %v311 = vlog2.pop %v286
    %v312 = vmul.f32 %v311, 0.6931472
    %v313 = vlog2.pop %v307
    %v314 = vmul.f32 %v313, 0.6931472
    %v315 = vlog2.pop %v308
    %v316 = vmul.f32 %v315, 0.6931472
    %v317 = vsub.f32 %v310, %v314
    %v318 = vsub.f32 %v312, %v316
    %s319 = sadd.s32 0, 16
    %s320 = scalar_lea.vmem [#allocation8], %s319
    %321 = vst [vmem:[%s320] sm:$0xff] %v317
    %322 = vst [vmem:[%s320 + $0x8] sm:$0xff] %v318
    %v323 = vsub.f32 %v291, %v275
    %v324 = vsub.f32 %v292, %v276
    %v325 = vlog2.pop %v275
    %v326 = vmul.f32 %v325, 0.6931472
    %v327 = vlog2.pop %v276
    %v328 = vmul.f32 %v327, 0.6931472
    %v329 = vlog2.pop %v323
    %v330 = vmul.f32 %v329, 0.6931472
    %v331 = vlog2.pop %v324
    %v332 = vmul.f32 %v331, 0.6931472
    %v333 = vsub.f32 %v326, %v330
    %v334 = vsub.f32 %v328, %v332
    %s335 = sadd.s32 0, 32
    %s336 = scalar_lea.vmem [#allocation8], %s335
    %337 = vst [vmem:[%s336] sm:$0xff] %v333
    %338 = vst [vmem:[%s336 + $0x8] sm:$0xff] %v334
    %v339 = vsub.f32 %v291, %v253
    %v340 = vsub.f32 %v292, %v254
    %v341 = vlog2.pop %v253
    %v342 = vmul.f32 %v341, 0.6931472
    %v343 = vlog2.pop %v254
    %v344 = vmul.f32 %v343, 0.6931472
    %v345 = vlog2.pop %v339
    %v346 = vmul.f32 %v345, 0.6931472
    %v347 = vlog2.pop %v340
    %v348 = vmul.f32 %v347, 0.6931472
    %v349 = vsub.f32 %v342, %v346
    %v350 = vsub.f32 %v344, %v348
    %s351 = sadd.s32 0, 48
    %s352 = scalar_lea.vmem [#allocation8], %s351
    %353 = vst [vmem:[%s352] sm:$0xff] %v349
    %354 = vst [vmem:[%s352 + $0x8] sm:$0xff] %v350
    // Predicated region
    $region22: #{tpu_custom_call.1} parent=1 // pred_check
      _
    $region23: #{tpu_custom_call.1} parent=1 // pred_check_branch
      %356 = sbr.rel (0) target = $region25
    $region24: #{tpu_custom_call.1} parent=1 // pred_region
      %358 = vsyncadd [#allocation5], 0
      %s359 = sshll.u32 [#allocation8], 4
      %s360 = int_to_ptr.vmem [resolvable:$true] %s359
      %s361 = sshll.u32 %s3, 4
      %s362 = int_to_ptr.hbm [resolvable:$true] %s361
      %367 = dma.vmem_to_hbm [thread:$0]  %s360, 1024, %s362, [#allocation5], 128, 128, 8
    $region25: #{tpu_custom_call.1} parent=1 // pred_fallthru
      _
    // Predicated region
    $region26: #{tpu_custom_call.1} parent=1 // pred_check
      _
    $region27: #{tpu_custom_call.1} parent=1 // pred_check_branch
      %369 = sbr.rel (0) target = $region29
    $region28: #{tpu_custom_call.1} parent=1 // pred_region
      %371 = dma.done [#allocation5], 1024
    $region29: #{tpu_custom_call.1} parent=1 // pred_fallthru
      _
    %372 = vsyncpa [#allocation4], 1
    %373 = vsyncpa [#allocation7], 1
    %374 = vsyncpa [#allocation5], 1

</llo_original>
